<compile_context>
chip_gen: v7x
topology: tpu7x:2x2x1
jax: 0.10.0
libtpu: 0.0.40
codegen_flags: <defaults>
</compile_context>

<pallas_src>
import functools

import jax
import jax.numpy as jnp
from jax import lax
from jax.experimental import pallas as pl
from jax.experimental.pallas import tpu as pltpu


def _round_up(x, m):
    return (x + m - 1) // m * m


# ----------------------------- kernels -------------------------------------
def _block_kernel_proj(xcat_ref, w1_ref, w2_ref, ws_ref, bias_ref, o_ref, *, cin):
    # xcat columns: [mid | left | right], each Cin wide, bf16.
    xc = xcat_ref[...]
    # conv1 (3x1) as one matmul over concatenated taps; BN1 scale folded into w1.
    h = jnp.dot(xc, w1_ref[...], preferred_element_type=jnp.float32)
    h = jnp.maximum(h + bias_ref[0:1, :], 0.0)
    # conv2 (1x1); BN2 scale folded into w2.
    h2 = jnp.dot(h.astype(w2_ref.dtype), w2_ref[...],
                 preferred_element_type=jnp.float32)
    # projection shortcut: its input equals the middle H-tap -> reuse xcat,
    # no separate HBM stream.  Shortcut-BN scale folded into ws.
    sc = jnp.dot(xc[:, :cin], ws_ref[...], preferred_element_type=jnp.float32)
    # merged bias row 1 = BN2 shift + shortcut-BN shift; final ReLU; bf16 store.
    o_ref[...] = jnp.maximum(h2 + sc + bias_ref[1:2, :], 0.0).astype(o_ref.dtype)


def _block_kernel_identity(xcat_ref, w1_ref, w2_ref, bias_ref, o_ref, *, cout_pad):
    # xcat columns: [mid padded to Cout_pad | left (Cin) | right (Cin)], bf16.
    xc = xcat_ref[...]
    h = jnp.dot(xc, w1_ref[...], preferred_element_type=jnp.float32)
    h = jnp.maximum(h + bias_ref[0:1, :], 0.0)
    h2 = jnp.dot(h.astype(w2_ref.dtype), w2_ref[...],
                 preferred_element_type=jnp.float32)
    # identity residual: lane-aligned, full-lane-tile slice (no zero concat,
    # no relayout) of the middle tap.
    sc = xc[:, :cout_pad].astype(jnp.float32)
    o_ref[...] = jnp.maximum(h2 + sc + bias_ref[1:2, :], 0.0).astype(o_ref.dtype)


# ----------------------------- wrapper --------------------------------------
def _vmem_capacity_bytes():
    try:
        cap = getattr(pltpu.get_tpu_info(), "vmem_capacity_bytes", None)
        if cap:
            return int(cap)
    except Exception:
        pass
    return 64 * 1024 * 1024  # conservative default = v7x per-TensorCore VMEM


def block_forward(x, p, stride):
    """x: [B, Cin, H, W] float32 (NCHW). Returns [B, Cout, H_out, W] float32."""
    B, Cin, H, W = x.shape
    Cout = p["w1"].shape[0]
    eps = 1e-5
    f32, bf16 = jnp.float32, jnp.bfloat16
    has_proj = "ws" in p

    H_out = (H + 2 - 3) // stride + 1
    # Lane-dense output; 256-align larger Cout for the 256-wide MXU (v6e/v7x).
    Cout_pad = 128 if Cout <= 128 else _round_up(Cout, 256)
    pad_c = Cout_pad - Cout

    if has_proj:
        # PyTorch's 1x1 projection strides BOTH spatial dims while the main
        # path strides only H; the module (and this kernel) is only
        # shape-consistent when stride==1 or W==1 -- in which case the
        # shortcut input is exactly the middle H-tap of xcat.
        assert stride == 1 or W == 1, "Block requires stride==1 or W==1"
    else:
        assert Cin == Cout and stride == 1

    # ---- three H-taps (mid, left, right), channels-last, bf16 --------------
    x_nhwc = jnp.transpose(x, (0, 2, 3, 1)).astype(bf16)          # [B,H,W,Cin]
    x_hpad = jnp.pad(x_nhwc, ((0, 0), (1, 1), (0, 0), (0, 0)))

    def tap(k):                                                    # tap k <-> kh=k
        return lax.slice(x_hpad, (0, k, 0, 0),
                         (B, k + stride * (H_out - 1) + 1, W, Cin),
                         (1, stride, 1, 1))

    mid, left, right = tap(1), tap(0), tap(2)

    # ---- fold conv biases + BN into weight scales and per-channel shifts ----
    w1_khc = jnp.transpose(p["w1"][:, :, :, 0], (2, 1, 0))         # (3, Cin, Cout)
    s1 = p["bn1_g"] / jnp.sqrt(p["bn1_v"] + eps)
    b1 = (p["b1"] - p["bn1_m"]) * s1 + p["bn1_b"]

    w2 = jnp.transpose(p["w2"][:, :, 0, 0], (1, 0))
    s2 = p["bn2_g"] / jnp.sqrt(p["bn2_v"] + eps)
    b2 = (p["b2"] - p["bn2_m"]) * s2 + p["bn2_b"]
    w2f = jnp.pad(w2 * s2[None, :], ((0, pad_c), (0, pad_c))).astype(bf16)

    if has_proj:
        xcat = jnp.concatenate([mid, left, right], axis=-1).reshape(-1, 3 * Cin)
        w1 = jnp.concatenate([w1_khc[1], w1_khc[0], w1_khc[2]], axis=0)
        ws = jnp.transpose(p["ws"][:, :, 0, 0], (1, 0))
        ss = p["bns_g"] / jnp.sqrt(p["bns_v"] + eps)
        bs = (p["bs"] - p["bns_m"]) * ss + p["bns_b"]
        wsf = jnp.pad(ws * ss[None, :], ((0, 0), (0, pad_c))).astype(bf16)
        b_last = b2 + bs
    else:
        # Pad the mid tap to Cout_pad channels so the in-kernel residual is a
        # lane-aligned full-width slice (no zero-concat per grid step).
        mid = jnp.pad(mid, ((0, 0), (0, 0), (0, 0), (0, Cout_pad - Cin)))
        xcat = jnp.concatenate([mid, left, right], axis=-1).reshape(
            -1, Cout_pad + 2 * Cin)
        w1 = jnp.concatenate(
            [jnp.pad(w1_khc[1], ((0, Cout_pad - Cin), (0, 0))),
             w1_khc[0], w1_khc[2]], axis=0)
        b_last = b2

    w1f = jnp.pad(w1 * s1[None, :], ((0, 0), (0, pad_c))).astype(bf16)
    bias = jnp.stack([jnp.pad(b1, (0, pad_c)),
                      jnp.pad(b_last, (0, pad_c))]).astype(f32)    # [2, Cout_pad]

    # ---- row tiling: VMEM-budgeted TN, >= ~4 grid steps, bf16 lane-dense out
    N, Kw = xcat.shape
    Kw_lanes = _round_up(Kw, 128)
    vmem_cap = _vmem_capacity_bytes()
    # ~48 MiB on v7x (64 MiB VMEM), ~96 MiB on v5e/v6e (128 MiB VMEM).
    vmem_limit = int(min(vmem_cap * 3 // 4, 100 * 1024 * 1024))
    # Resident weights + bias (counted double-buffered so the budget is safe
    # even if the single-buffer hint is unavailable).
    w_bytes = 2 * ((_round_up(Kw, 16) + Cout_pad
                    + (_round_up(Cin, 16) if has_proj else 0)) * Cout_pad * 2
                   + 8 * Cout_pad * 4)
    # Per-row streaming bytes: bf16 input/output double-buffered (lane-padded)
    # + f32 epilogue temporaries (h, h2, sc, slack).
    row_bytes = 2 * Kw_lanes * 2 + 2 * Cout_pad * 2 + 4 * Cout_pad * 4
    budget = max(0, vmem_limit - w_bytes - 6 * 1024 * 1024)
    tn_vmem = max(16, budget // row_bytes // 16 * 16)
    TN = int(max(16, min(tn_vmem, 2048, _round_up(-(-N // 4), 16))))
    N_pad = _round_up(N, TN)
    xcat = jnp.pad(xcat, ((0, N_pad - N), (0, 0)))
    grid = (N_pad // TN,)

    cparams = pltpu.CompilerParams(dimension_semantics=("parallel",),
                                   vmem_limit_bytes=vmem_limit)
    out_shape = jax.ShapeDtypeStruct((N_pad, Cout_pad), bf16)
    tile = lambda i: (i, 0)

    def call(single_buffer_weights):
        def inv(shape):
            idx = lambda i: (0, 0)
            if single_buffer_weights:
                # Grid-invariant operands: one VMEM buffer, no double-buffer.
                return pl.BlockSpec(shape, idx, pipeline_mode=pl.Buffered(1))
            return pl.BlockSpec(shape, idx)

        if has_proj:
            kernel = functools.partial(_block_kernel_proj, cin=Cin)
            in_specs = [pl.BlockSpec((TN, Kw), tile),
                        inv((Kw, Cout_pad)),
                        inv((Cout_pad, Cout_pad)),
                        inv((Cin, Cout_pad)),
                        inv((2, Cout_pad))]
            args = (xcat, w1f, w2f, wsf, bias)
        else:
            kernel = functools.partial(_block_kernel_identity, cout_pad=Cout_pad)
            in_specs = [pl.BlockSpec((TN, Kw), tile),
                        inv((Kw, Cout_pad)),
                        inv((Cout_pad, Cout_pad)),
                        inv((2, Cout_pad))]
            args = (xcat, w1f, w2f, bias)

        return pl.pallas_call(
            kernel,
            out_shape=out_shape,
            grid=grid,
            in_specs=in_specs,
            out_specs=pl.BlockSpec((TN, Cout_pad), tile),
            compiler_params=cparams,
        )(*args)

    try:
        out = call(True)
    except Exception:
        # pipeline_mode / Buffered(1) not supported on this jax version or
        # backend -> fall back to default double-buffering (budget still safe).
        out = call(False)

    out = out[:N, :Cout].reshape(B, H_out, W, Cout)
    return jnp.transpose(out, (0, 3, 1, 2)).astype(f32)            # back to NCHW


# -------------------- pure-JAX reference (for validation) --------------------
def _conv2d(x, w, b, stride, padding):
    y = lax.conv_general_dilated(x, w, window_strides=stride, padding=padding,
                                 dimension_numbers=('NCHW', 'OIHW', 'NCHW'))
    return y + b[None, :, None, None]


def _bn(x, g, bta, m, v, eps=1e-5):
    return ((x - m[None, :, None, None]) / jnp.sqrt(v[None, :, None, None] + eps)
            * g[None, :, None, None] + bta[None, :, None, None])


def block_reference(x, p, stride):
    h = _conv2d(x, p["w1"], p["b1"], (stride, 1), [(1, 1), (0, 0)])
    h = _bn(h, p["bn1_g"], p["bn1_b"], p["bn1_m"], p["bn1_v"])
    h = jnp.maximum(h, 0.0)
    h = _conv2d(h, p["w2"], p["b2"], (1, 1), [(0, 0), (0, 0)])
    h = _bn(h, p["bn2_g"], p["bn2_b"], p["bn2_m"], p["bn2_v"])
    if "ws" in p:
        s = _conv2d(x, p["ws"], p["bs"], (stride, stride), [(0, 0), (0, 0)])
        s = _bn(s, p["bns_g"], p["bns_b"], p["bns_m"], p["bns_v"])
    else:
        s = x
    return jnp.maximum(h + s, 0.0)


def init_params(key, cin, cout, stride):
    ks = jax.random.split(key, 24)
    f32 = jnp.float32
    p = {
        "w1": 0.1 * jax.random.normal(ks[0], (cout, cin, 3, 1), f32),
        "b1": 0.1 * jax.random.normal(ks[1], (cout,), f32),
        "bn1_g": 1.0 + 0.1 * jax.random.normal(ks[2], (cout,), f32),
        "bn1_b": 0.1 * jax.random.normal(ks[3], (cout,), f32),
        "bn1_m": 0.1 * jax.random.normal(ks[4], (cout,), f32),
        "bn1_v": 0.5 + jnp.abs(jax.random.normal(ks[5], (cout,), f32)),
        "w2": 0.1 * jax.random.normal(ks[6], (cout, cout, 1, 1), f32),
        "b2": 0.1 * jax.random.normal(ks[7], (cout,), f32),
        "bn2_g": 1.0 + 0.1 * jax.random.normal(ks[8], (cout,), f32),
        "bn2_b": 0.1 * jax.random.normal(ks[9], (cout,), f32),
        "bn2_m": 0.1 * jax.random.normal(ks[10], (cout,), f32),
        "bn2_v": 0.5 + jnp.abs(jax.random.normal(ks[11], (cout,), f32)),
    }
    if cin != cout or stride != 1:
        p.update({
            "ws": 0.1 * jax.random.normal(ks[12], (cout, cin, 1, 1), f32),
            "bs": 0.1 * jax.random.normal(ks[13], (cout,), f32),
            "bns_g": 1.0 + 0.1 * jax.random.normal(ks[14], (cout,), f32),
            "bns_b": 0.1 * jax.random.normal(ks[15], (cout,), f32),
            "bns_m": 0.1 * jax.random.normal(ks[16], (cout,), f32),
            "bns_v": 0.5 + jnp.abs(jax.random.normal(ks[17], (cout,), f32)),
        })
    return p


if __name__ == "__main__":
    key = jax.random.PRNGKey(0)
    configs = [
        # (B, Cin, Cout, H, W, stride)
        (2, 4, 8, 16, 3, 1),   # projection shortcut (Cin != Cout), stride 1
        (2, 8, 8, 16, 3, 1),   # identity shortcut
        (2, 4, 8, 16, 1, 2),   # projection shortcut, stride 2 (modal dim == 1)
    ]
    for i, (B, Cin, Cout, H, W, stride) in enumerate(configs):
        kx, kp = jax.random.split(jax.random.fold_in(key, i))
        x = jax.random.normal(kx, (B, Cin, H, W), jnp.float32)
        params = init_params(kp, Cin, Cout, stride)

        out = jax.block_until_ready(block_forward(x, params, stride))
        ref = block_reference(x, params, stride)
        assert out.shape == ref.shape, (out.shape, ref.shape)
        # bf16 matmul/store path: allow ~1e-2-scale deviation vs f32 reference.
        err = float(jnp.max(jnp.abs(out - ref)))
        assert err < 5e-2, err
    print("KERNEL_OK")
</pallas_src>

<mosaic_0001>
module attributes {stable_mosaic.version = 11 : i64} {
  func.func @_block_kernel_proj(%arg0: i32, %arg1: memref<32x12xbf16, #tpu.memory_space<vmem>>, %arg2: memref<12x128xbf16, #tpu.memory_space<vmem>>, %arg3: memref<128x128xbf16, #tpu.memory_space<vmem>>, %arg4: memref<4x128xbf16, #tpu.memory_space<vmem>>, %arg5: memref<2x128xf32, #tpu.memory_space<vmem>>, %arg6: memref<32x128xbf16, #tpu.memory_space<vmem>>) attributes {dimension_semantics = [#tpu.dimension_semantics<parallel>], iteration_bounds = array<i64: 3>, scalar_prefetch = 0 : i64, scratch_operands = 0 : i64, tpu.core_type = #tpu.core_type<tc>, window_params = [{transform_indices = @transform_0, window_bounds = array<i64: 32, 12>}, {pipeline_mode = #tpu.pipeline_mode<synchronous>, transform_indices = @transform_1, window_bounds = array<i64: 12, 128>}, {pipeline_mode = #tpu.pipeline_mode<synchronous>, transform_indices = @transform_2, window_bounds = array<i64: 128, 128>}, {pipeline_mode = #tpu.pipeline_mode<synchronous>, transform_indices = @transform_3, window_bounds = array<i64: 4, 128>}, {pipeline_mode = #tpu.pipeline_mode<synchronous>, transform_indices = @transform_4, window_bounds = array<i64: 2, 128>}, {transform_indices = @transform_5, window_bounds = array<i64: 32, 128>}]} {
    %c0 = arith.constant 0 : index
    %c0_0 = arith.constant 0 : index
    %0 = vector.load %arg1[%c0, %c0_0] : memref<32x12xbf16, #tpu.memory_space<vmem>>, vector<32x12xbf16>
    %c0_1 = arith.constant 0 : index
    %c0_2 = arith.constant 0 : index
    %1 = vector.load %arg2[%c0_1, %c0_2] : memref<12x128xbf16, #tpu.memory_space<vmem>>, vector<12x128xbf16>
    %cst = arith.constant dense<0.000000e+00> : vector<32x128xf32>
    %2 = tpu.matmul %0, %1, %cst {dimension_numbers = #tpu.dot_dimension_numbers<[1], [0], [0], [1], [0, 0, 1, 1], [], []>} : vector<32x12xbf16>, vector<12x128xbf16>, vector<32x128xf32> -> vector<32x128xf32>
    %c0_3 = arith.constant 0 : index
    %c0_4 = arith.constant 0 : index
    %3 = vector.load %arg5[%c0_3, %c0_4] : memref<2x128xf32, #tpu.memory_space<vmem>>, vector<1x128xf32>
    %4 = vector.broadcast %3 : vector<1x128xf32> to vector<32x128xf32>
    %5 = arith.addf %2, %4 : vector<32x128xf32>
    %cst_5 = arith.constant 0.000000e+00 : f32
    %6 = vector.broadcast %cst_5 : f32 to vector<32x128xf32>
    %7 = arith.maximumf %5, %6 : vector<32x128xf32>
    %8 = arith.truncf %7 : vector<32x128xf32> to vector<32x128xbf16>
    %c0_6 = arith.constant 0 : index
    %c0_7 = arith.constant 0 : index
    %9 = vector.load %arg3[%c0_6, %c0_7] : memref<128x128xbf16, #tpu.memory_space<vmem>>, vector<128x128xbf16>
    %cst_8 = arith.constant dense<0.000000e+00> : vector<32x128xf32>
    %10 = tpu.matmul %8, %9, %cst_8 {dimension_numbers = #tpu.dot_dimension_numbers<[1], [0], [0], [1], [0, 0, 1, 1], [], []>} : vector<32x128xbf16>, vector<128x128xbf16>, vector<32x128xf32> -> vector<32x128xf32>
    %11 = vector.extract_strided_slice %0 {offsets = [0, 0], sizes = [32, 4], strides = [1, 1]} : vector<32x12xbf16> to vector<32x4xbf16>
    %c0_9 = arith.constant 0 : index
    %c0_10 = arith.constant 0 : index
    %12 = vector.load %arg4[%c0_9, %c0_10] : memref<4x128xbf16, #tpu.memory_space<vmem>>, vector<4x128xbf16>
    %cst_11 = arith.constant dense<0.000000e+00> : vector<32x128xf32>
    %13 = tpu.matmul %11, %12, %cst_11 {dimension_numbers = #tpu.dot_dimension_numbers<[1], [0], [0], [1], [0, 0, 1, 1], [], []>} : vector<32x4xbf16>, vector<4x128xbf16>, vector<32x128xf32> -> vector<32x128xf32>
    %14 = arith.addf %10, %13 : vector<32x128xf32>
    %c1 = arith.constant 1 : index
    %c0_12 = arith.constant 0 : index
    %15 = vector.load %arg5[%c1, %c0_12] : memref<2x128xf32, #tpu.memory_space<vmem>>, vector<1x128xf32>
    %16 = vector.broadcast %15 : vector<1x128xf32> to vector<32x128xf32>
    %17 = arith.addf %14, %16 : vector<32x128xf32>
    %cst_13 = arith.constant 0.000000e+00 : f32
    %18 = vector.broadcast %cst_13 : f32 to vector<32x128xf32>
    %19 = arith.maximumf %17, %18 : vector<32x128xf32>
    %20 = arith.truncf %19 : vector<32x128xf32> to vector<32x128xbf16>
    %c0_14 = arith.constant 0 : index
    %c0_15 = arith.constant 0 : index
    %21 = vector.load %arg6[%c0_14, %c0_15] : memref<32x128xbf16, #tpu.memory_space<vmem>>, vector<32x128xbf16>
    tpu.vector_store %arg6[%c0_14, %c0_15], %20 {strides = array<i32>} : memref<32x128xbf16, #tpu.memory_space<vmem>>, vector<32x128xbf16>,
    return
  }
  func.func @transform_0(%arg0: i32) -> (i32, i32) {
    %c0_i32 = arith.constant 0 : i32
    %c0_i32_0 = arith.constant 0 : i32
    return %arg0, %c0_i32 : i32, i32
  }
  func.func @transform_1(%arg0: i32) -> (i32, i32) {
    %c0_i32 = arith.constant 0 : i32
    %c0_i32_0 = arith.constant 0 : i32
    %c0_i32_1 = arith.constant 0 : i32
    return %c0_i32, %c0_i32_0 : i32, i32
  }
  func.func @transform_2(%arg0: i32) -> (i32, i32) {
    %c0_i32 = arith.constant 0 : i32
    %c0_i32_0 = arith.constant 0 : i32
    %c0_i32_1 = arith.constant 0 : i32
    return %c0_i32, %c0_i32_0 : i32, i32
  }
  func.func @transform_3(%arg0: i32) -> (i32, i32) {
    %c0_i32 = arith.constant 0 : i32
    %c0_i32_0 = arith.constant 0 : i32
    %c0_i32_1 = arith.constant 0 : i32
    return %c0_i32, %c0_i32_0 : i32, i32
  }
  func.func @transform_4(%arg0: i32) -> (i32, i32) {
    %c0_i32 = arith.constant 0 : i32
    %c0_i32_0 = arith.constant 0 : i32
    %c0_i32_1 = arith.constant 0 : i32
    return %c0_i32, %c0_i32_0 : i32, i32
  }
  func.func @transform_5(%arg0: i32) -> (i32, i32) {
    %c0_i32 = arith.constant 0 : i32
    %c0_i32_0 = arith.constant 0 : i32
    return %arg0, %c0_i32 : i32, i32
  }
}

module attributes {stable_mosaic.version = 11 : i64} {
  func.func @_block_kernel_proj(%arg0: i32, %arg1: memref<32x12xbf16, #tpu.memory_space<vmem>>, %arg2: memref<12x128xbf16, #tpu.memory_space<vmem>>, %arg3: memref<128x128xbf16, #tpu.memory_space<vmem>>, %arg4: memref<4x128xbf16, #tpu.memory_space<vmem>>, %arg5: memref<2x128xf32, #tpu.memory_space<vmem>>, %arg6: memref<32x128xbf16, #tpu.memory_space<vmem>>) attributes {dimension_semantics = [#tpu.dimension_semantics<parallel>], iteration_bounds = array<i64: 3>, scalar_prefetch = 0 : i64, scratch_operands = 0 : i64, tpu.core_type = #tpu.core_type<tc>, window_params = [{transform_indices = @transform_0, window_bounds = array<i64: 32, 12>}, {pipeline_mode = #tpu.pipeline_mode<synchronous>, transform_indices = @transform_1, window_bounds = array<i64: 12, 128>}, {pipeline_mode = #tpu.pipeline_mode<synchronous>, transform_indices = @transform_2, window_bounds = array<i64: 128, 128>}, {pipeline_mode = #tpu.pipeline_mode<synchronous>, transform_indices = @transform_3, window_bounds = array<i64: 4, 128>}, {pipeline_mode = #tpu.pipeline_mode<synchronous>, transform_indices = @transform_4, window_bounds = array<i64: 2, 128>}, {transform_indices = @transform_5, window_bounds = array<i64: 32, 128>}]} {
    %c0 = arith.constant 0 : index
    %c0_0 = arith.constant 0 : index
    %0 = vector.load %arg1[%c0, %c0_0] : memref<32x12xbf16, #tpu.memory_space<vmem>>, vector<32x12xbf16>
    %c0_1 = arith.constant 0 : index
    %c0_2 = arith.constant 0 : index
    %1 = vector.load %arg2[%c0_1, %c0_2] : memref<12x128xbf16, #tpu.memory_space<vmem>>, vector<12x128xbf16>
    %cst = arith.constant dense<0.000000e+00> : vector<32x128xf32>
    %2 = tpu.matmul %0, %1, %cst {dimension_numbers = #tpu.dot_dimension_numbers<[1], [0], [0], [1], [0, 0, 1, 1], [], []>} : vector<32x12xbf16>, vector<12x128xbf16>, vector<32x128xf32> -> vector<32x128xf32>
    %c0_3 = arith.constant 0 : index
    %c0_4 = arith.constant 0 : index
    %3 = vector.load %arg5[%c0_3, %c0_4] : memref<2x128xf32, #tpu.memory_space<vmem>>, vector<1x128xf32>
    %4 = vector.broadcast %3 : vector<1x128xf32> to vector<32x128xf32>
    %5 = arith.addf %2, %4 : vector<32x128xf32>
    %cst_5 = arith.constant 0.000000e+00 : f32
    %6 = vector.broadcast %cst_5 : f32 to vector<32x128xf32>
    %7 = arith.maximumf %5, %6 : vector<32x128xf32>
    %8 = arith.truncf %7 : vector<32x128xf32> to vector<32x128xbf16>
    %c0_6 = arith.constant 0 : index
    %c0_7 = arith.constant 0 : index
    %9 = vector.load %arg3[%c0_6, %c0_7] : memref<128x128xbf16, #tpu.memory_space<vmem>>, vector<128x128xbf16>
    %cst_8 = arith.constant dense<0.000000e+00> : vector<32x128xf32>
    %10 = tpu.matmul %8, %9, %cst_8 {dimension_numbers = #tpu.dot_dimension_numbers<[1], [0], [0], [1], [0, 0, 1, 1], [], []>} : vector<32x128xbf16>, vector<128x128xbf16>, vector<32x128xf32> -> vector<32x128xf32>
    %11 = vector.extract_strided_slice %0 {offsets = [0, 0], sizes = [32, 4], strides = [1, 1]} : vector<32x12xbf16> to vector<32x4xbf16>
    %c0_9 = arith.constant 0 : index
    %c0_10 = arith.constant 0 : index
    %12 = vector.load %arg4[%c0_9, %c0_10] : memref<4x128xbf16, #tpu.memory_space<vmem>>, vector<4x128xbf16>
    %cst_11 = arith.constant dense<0.000000e+00> : vector<32x128xf32>
    %13 = tpu.matmul %11, %12, %cst_11 {dimension_numbers = #tpu.dot_dimension_numbers<[1], [0], [0], [1], [0, 0, 1, 1], [], []>} : vector<32x4xbf16>, vector<4x128xbf16>, vector<32x128xf32> -> vector<32x128xf32>
    %14 = arith.addf %10, %13 : vector<32x128xf32>
    %c1 = arith.constant 1 : index
    %c0_12 = arith.constant 0 : index
    %15 = vector.load %arg5[%c1, %c0_12] : memref<2x128xf32, #tpu.memory_space<vmem>>, vector<1x128xf32>
    %16 = vector.broadcast %15 : vector<1x128xf32> to vector<32x128xf32>
    %17 = arith.addf %14, %16 : vector<32x128xf32>
    %cst_13 = arith.constant 0.000000e+00 : f32
    %18 = vector.broadcast %cst_13 : f32 to vector<32x128xf32>
    %19 = arith.maximumf %17, %18 : vector<32x128xf32>
    %20 = arith.truncf %19 : vector<32x128xf32> to vector<32x128xbf16>
    %c0_14 = arith.constant 0 : index
    %c0_15 = arith.constant 0 : index
    %21 = vector.load %arg6[%c0_14, %c0_15] : memref<32x128xbf16, #tpu.memory_space<vmem>>, vector<32x128xbf16>
    tpu.vector_store %arg6[%c0_14, %c0_15], %20 {strides = array<i32>} : memref<32x128xbf16, #tpu.memory_space<vmem>>, vector<32x128xbf16>,
    return
  }
  func.func @transform_0(%arg0: i32) -> (i32, i32) {
    %c0_i32 = arith.constant 0 : i32
    %c0_i32_0 = arith.constant 0 : i32
    return %arg0, %c0_i32 : i32, i32
  }
  func.func @transform_1(%arg0: i32) -> (i32, i32) {
    %c0_i32 = arith.constant 0 : i32
    %c0_i32_0 = arith.constant 0 : i32
    %c0_i32_1 = arith.constant 0 : i32
    return %c0_i32, %c0_i32_0 : i32, i32
  }
  func.func @transform_2(%arg0: i32) -> (i32, i32) {
    %c0_i32 = arith.constant 0 : i32
    %c0_i32_0 = arith.constant 0 : i32
    %c0_i32_1 = arith.constant 0 : i32
    return %c0_i32, %c0_i32_0 : i32, i32
  }
  func.func @transform_3(%arg0: i32) -> (i32, i32) {
    %c0_i32 = arith.constant 0 : i32
    %c0_i32_0 = arith.constant 0 : i32
    %c0_i32_1 = arith.constant 0 : i32
    return %c0_i32, %c0_i32_0 : i32, i32
  }
  func.func @transform_4(%arg0: i32) -> (i32, i32) {
    %c0_i32 = arith.constant 0 : i32
    %c0_i32_0 = arith.constant 0 : i32
    %c0_i32_1 = arith.constant 0 : i32
    return %c0_i32, %c0_i32_0 : i32, i32
  }
  func.func @transform_5(%arg0: i32) -> (i32, i32) {
    %c0_i32 = arith.constant 0 : i32
    %c0_i32_0 = arith.constant 0 : i32
    return %arg0, %c0_i32 : i32, i32
  }
}

</mosaic_0001>

<llo_original>
// kernel: tpu_custom_call.1
$region0: #{tpu_custom_call.1}
  #allocation0 [shape = 'u32[]', space=smem, size = 0x4, offset = 0x4, fixed_abs, tag = 'smem constant byte address 0x4 - core index']
  #allocation1 [shape = 'u32[144,128]{1,0:T(1,128)}', space=vmem, size = 0x12000, scoped, tag = 'internal scratch']
  %s0 = inlined_call_operand.vmem [shape: bf16[96,12], index: 0, kind: input, shape index: {}]
  %s1 = inlined_call_operand.vmem [shape: bf16[12,128], index: 1, kind: input, shape index: {}]
  %s2 = inlined_call_operand.hbm [shape: bf16[128,128], index: 2, kind: input, shape index: {}]
  %s3 = inlined_call_operand.vmem [shape: bf16[4,128], index: 3, kind: input, shape index: {}]
  %s4 = inlined_call_operand.vmem [shape: f32[2,128], index: 4, kind: input, shape index: {}]
  %s5 = inlined_call_operand.hbm [shape: bf16[96,128], index: 5, kind: output, shape index: {}]
  %s6 = sld [smem:[#allocation0]]
  $region57: #{tpu_custom_call.1} parent=0
    _
  %s8 = ssub.s32 1, %s6
  %s9 = scalar_select 0, %s8, %s6
  $region1: #{tpu_custom_call.1} parent=0
    #allocation2 [shape = 'u8[32768]{0}', space=vmem, size = 0x8000, scoped, tag = 'input window, operand 2, single buffered']
    #allocation3 [shape = 's32[2]{0}', space=sflag, size = 0x8, scoped, tag = 'scoped memory for tpu_custom_call.1']
    #allocation4 [shape = 's32[2]{0}', space=sflag, size = 0x8, scoped, tag = 'scoped memory for tpu_custom_call.1']
    #allocation5 [shape = 'u8[16384]{0}', space=vmem, size = 0x4000, scoped, tag = 'output window, operand 0']
    %10 = vsyncpa [#allocation3], 0
    %11 = vsyncpa [#allocation4], 0
    %s12 = scalar_lea.sflag [#allocation4], 1
    %13 = vsyncpa %s12, 0
    loop: start=0, step=1, limit=5
    $region2: #{tpu_custom_call.1} parent=1 // loop_pre_header
      _
    $region3: #{tpu_custom_call.1} parent=1 // loop_header
      %s15 = sphi 0, %s19
      %p16 = scmp.ge.s32.totalorder %s15, 5
      %s25 = sphi 0, %s27
      %s28 = sphi 0, %s25
      %s29 = sphi 0, %s28
      %s45 = sphi 0, %s29
      %s49 = sphi 0, %s49
      %s51 = sphi 0, %s49
      %s52 = sphi 0, %s51
      %s66 = sphi 0, %s52
      %s70 = sphi 0, %s70
      %s72 = sphi 0, %s70
      %s73 = sphi 0, %s72
      %s87 = sphi 0, %s73
      %s91 = sphi 0, %s91
      %s93 = sphi 0, %s91
      %s94 = sphi 0, %s93
      %s108 = sphi 0, %s94
      %s112 = sphi 0, %s112
      %s114 = sphi 0, %s112
      %s115 = sphi 0, %s114
      %s129 = sphi 0, %s115
      %s135 = sphi 0, %s137
      %s138 = sphi 0, %s135
      %s139 = sphi 0, %s138
      %s155 = sphi 0, %s139
    $region4: #{tpu_custom_call.1} parent=1 // loop_header_branch
      %18 = sbr.rel (%p16) target = $region8
    $region5: #{tpu_custom_call.1} parent=1 // loop_body
      %s20 = ssub.s32 %s15, 1
      %s21 = ssub.s32 %s15, 2
      %s22 = sadd.s32 %s15, 1
      %s23 = ssub.s32 %s15, %s22
      %p24 = scmp.eq.s32.totalorder %s23, 0
      %s26 = sadd.s32 %s25, 1
      %s27 = scalar_select %p24, %s25, %s26
      %p30 = pneg %p24
      %p31 = scmp.eq.s32.totalorder %s15, 2
      %p32 = por %p30, %p31
      %p33 = scmp.ne.s32.totalorder %s25, %s28
      %p34 = scmp.eq.s32.totalorder %s15, 0
      %p35 = por %p33, %p34
      %p36 = scmp.ne.s32.totalorder %s25, %s28
      %p37 = scmp.eq.s32.totalorder %s20, 2
      %p38 = por %p36, %p37
      %p39 = scmp.ne.s32.totalorder %s28, %s29
      %p40 = scmp.eq.s32.totalorder %s20, 0
      %p41 = por %p39, %p40
      %p42 = scmp.ne.s32.totalorder %s28, %s29
      %p43 = scmp.eq.s32.totalorder %s21, 2
      %p44 = por %p42, %p43
      %p46 = scmp.ne.s32.totalorder %s29, %s45
      %p47 = scmp.eq.s32.totalorder %s21, 0
      %p48 = por %p46, %p47
      %s50 = sadd.s32 %s49, 1
      %p53 = scmp.eq.s32.totalorder %s15, 2
      %p54 = scmp.ne.s32.totalorder %s49, %s51
      %p55 = scmp.eq.s32.totalorder %s15, 0
      %p56 = por %p54, %p55
      %p57 = scmp.ne.s32.totalorder %s49, %s51
      %p58 = scmp.eq.s32.totalorder %s20, 2
      %p59 = por %p57, %p58
      %p60 = scmp.ne.s32.totalorder %s51, %s52
      %p61 = scmp.eq.s32.totalorder %s20, 0
      %p62 = por %p60, %p61
      %p63 = scmp.ne.s32.totalorder %s51, %s52
      %p64 = scmp.eq.s32.totalorder %s21, 2
      %p65 = por %p63, %p64
      %p67 = scmp.ne.s32.totalorder %s52, %s66
      %p68 = scmp.eq.s32.totalorder %s21, 0
      %p69 = por %p67, %p68
      %s71 = sadd.s32 %s70, 1
      %p74 = scmp.eq.s32.totalorder %s15, 2
      %p75 = scmp.ne.s32.totalorder %s70, %s72
      %p76 = scmp.eq.s32.totalorder %s15, 0
      %p77 = por %p75, %p76
      %p78 = scmp.ne.s32.totalorder %s70, %s72
      %p79 = scmp.eq.s32.totalorder %s20, 2
      %p80 = por %p78, %p79
      %p81 = scmp.ne.s32.totalorder %s72, %s73
      %p82 = scmp.eq.s32.totalorder %s20, 0
      %p83 = por %p81, %p82
      %p84 = scmp.ne.s32.totalorder %s72, %s73
      %p85 = scmp.eq.s32.totalorder %s21, 2
      %p86 = por %p84, %p85
      %p88 = scmp.ne.s32.totalorder %s73, %s87
      %p89 = scmp.eq.s32.totalorder %s21, 0
      %p90 = por %p88, %p89
      %s92 = sadd.s32 %s91, 1
      %p95 = scmp.eq.s32.totalorder %s15, 2
      %p96 = scmp.ne.s32.totalorder %s91, %s93
      %p97 = scmp.eq.s32.totalorder %s15, 0
      %p98 = por %p96, %p97
      %p99 = scmp.ne.s32.totalorder %s91, %s93
      %p100 = scmp.eq.s32.totalorder %s20, 2
      %p101 = por %p99, %p100
      %p102 = scmp.ne.s32.totalorder %s93, %s94
      %p103 = scmp.eq.s32.totalorder %s20, 0
      %p104 = por %p102, %p103
      %p105 = scmp.ne.s32.totalorder %s93, %s94
      %p106 = scmp.eq.s32.totalorder %s21, 2
      %p107 = por %p105, %p106
      %p109 = scmp.ne.s32.totalorder %s94, %s108
      %p110 = scmp.eq.s32.totalorder %s21, 0
      %p111 = por %p109, %p110
      %s113 = sadd.s32 %s112, 1
      %p116 = scmp.eq.s32.totalorder %s15, 2
      %p117 = scmp.ne.s32.totalorder %s112, %s114
      %p118 = scmp.eq.s32.totalorder %s15, 0
      %p119 = por %p117, %p118
      %p120 = scmp.ne.s32.totalorder %s112, %s114
      %p121 = scmp.eq.s32.totalorder %s20, 2
      %p122 = por %p120, %p121
      %p123 = scmp.ne.s32.totalorder %s114, %s115
      %p124 = scmp.eq.s32.totalorder %s20, 0
      %p125 = por %p123, %p124
      %p126 = scmp.ne.s32.totalorder %s114, %s115
      %p127 = scmp.eq.s32.totalorder %s21, 2
      %p128 = por %p126, %p127
      %p130 = scmp.ne.s32.totalorder %s115, %s129
      %p131 = scmp.eq.s32.totalorder %s21, 0
      %p132 = por %p130, %p131
      %s133 = ssub.s32 %s15, %s22
      %p134 = scmp.eq.s32.totalorder %s133, 0
      %s136 = sadd.s32 %s135, 1
      %s137 = scalar_select %p134, %s135, %s136
      %p140 = pneg %p134
      %p141 = scmp.eq.s32.totalorder %s15, 2
      %p142 = por %p140, %p141
      %p143 = scmp.ne.s32.totalorder %s135, %s138
      %p144 = scmp.eq.s32.totalorder %s15, 0
      %p145 = por %p143, %p144
      %p146 = scmp.ne.s32.totalorder %s135, %s138
      %p147 = scmp.eq.s32.totalorder %s20, 2
      %p148 = por %p146, %p147
      %p149 = scmp.ne.s32.totalorder %s138, %s139
      %p150 = scmp.eq.s32.totalorder %s20, 0
      %p151 = por %p149, %p150
      %p152 = scmp.ne.s32.totalorder %s138, %s139
      %p153 = scmp.eq.s32.totalorder %s21, 2
      %p154 = por %p152, %p153
      %p156 = scmp.ne.s32.totalorder %s139, %s155
      %p157 = scmp.eq.s32.totalorder %s21, 0
      %p158 = por %p156, %p157
      %p159 = scmp.le.s32.totalorder 1, %s15
      %p160 = scmp.lt.s32.totalorder %s15, 4
      %p161 = pnand %p159, %p160
      %p162 = pneg %p161
      // Predicated region
      $region9: #{tpu_custom_call.1} parent=5 // pred_check
        _
      $region10: #{tpu_custom_call.1} parent=5 // pred_check_branch
        %164 = sbr.rel (%p161) target = $region12
      $region11: #{tpu_custom_call.1} parent=5 // pred_region
        %s165 = ssub.s32 %s15, 1
        // Predicated region
        $region13: #{tpu_custom_call.1} parent=11 // pred_check
          %p166 = pneg %p62
        $region14: #{tpu_custom_call.1} parent=11 // pred_check_branch
          %168 = sbr.rel (%p166) target = $region16
        $region15: #{tpu_custom_call.1} parent=11 // pred_region
          _
        $region16: #{tpu_custom_call.1} parent=11 // pred_fallthru
          _
        // Predicated region
        $region17: #{tpu_custom_call.1} parent=11 // pred_check
          %p169 = pneg %p83
        $region18: #{tpu_custom_call.1} parent=11 // pred_check_branch
          %171 = sbr.rel (%p169) target = $region20
        $region19: #{tpu_custom_call.1} parent=11 // pred_region
          %s173 = ssub.s32 1024, 1024
          %174 = vsyncadd [#allocation3], %s173
          %s175 = sshll.u32 [#allocation2], 4
          %s176 = int_to_ptr.vmem [resolvable:$true] %s175
          %181 = dma.hbm_to_vmem [thread:$0]  %s2, 1024, %s176, [#allocation3], 64, 64, 4
        $region20: #{tpu_custom_call.1} parent=11 // pred_fallthru
          _
        // Predicated region
        $region21: #{tpu_custom_call.1} parent=11 // pred_check
          %p182 = pneg %p104
        $region22: #{tpu_custom_call.1} parent=11 // pred_check_branch
          %184 = sbr.rel (%p182) target = $region24
        $region23: #{tpu_custom_call.1} parent=11 // pred_region
          _
        $region24: #{tpu_custom_call.1} parent=11 // pred_fallthru
          _
        // Predicated region
        $region25: #{tpu_custom_call.1} parent=11 // pred_check
          %p185 = pneg %p125
        $region26: #{tpu_custom_call.1} parent=11 // pred_check_branch
          %187 = sbr.rel (%p185) target = $region28
        $region27: #{tpu_custom_call.1} parent=11 // pred_region
          _
        $region28: #{tpu_custom_call.1} parent=11 // pred_fallthru
          _
      $region12: #{tpu_custom_call.1} parent=5 // pred_fallthru
        _
      %p188 = scmp.lt.s32.totalorder %s15, 3
      // Predicated region
      $region29: #{tpu_custom_call.1} parent=5 // pred_check
        %p189 = pneg %p188
      $region30: #{tpu_custom_call.1} parent=5 // pred_check_branch
        %191 = sbr.rel (%p189) target = $region32
      $region31: #{tpu_custom_call.1} parent=5 // pred_region
        // Predicated region
        $region33: #{tpu_custom_call.1} parent=31 // pred_check
          %p192 = pneg %p35
        $region34: #{tpu_custom_call.1} parent=31 // pred_check_branch
          %194 = sbr.rel (%p192) target = $region36
        $region35: #{tpu_custom_call.1} parent=31 // pred_region
          %s195 = smul.u32 4, %s15
          %p196 = scmp.lt.s32.totalorder %s195, 11
          %s197 = scalar_select %p196, %s195, 11
          %s198 = smul.addr %s197, 4
          %s199 = scalar_lea.vmem %s0, %s198
          %s200 = smul.u32 4, %s15
        $region36: #{tpu_custom_call.1} parent=31 // pred_fallthru
          _
      $region32: #{tpu_custom_call.1} parent=5 // pred_fallthru
        _
      %p201 = scmp.le.s32.totalorder 1, %s15
      %p202 = scmp.lt.s32.totalorder %s15, 4
      %p203 = pnand %p201, %p202
      %p204 = pneg %p203
      // Predicated region
      $region37: #{tpu_custom_call.1} parent=5 // pred_check
        _
      $region38: #{tpu_custom_call.1} parent=5 // pred_check_branch
        %206 = sbr.rel (%p203) target = $region40
      $region39: #{tpu_custom_call.1} parent=5 // pred_region
        %s207 = ssub.s32 %s15, 1
        // Predicated region
        $region41: #{tpu_custom_call.1} parent=39 // pred_check
          %p208 = pneg %p83
        $region42: #{tpu_custom_call.1} parent=39 // pred_check_branch
          %210 = sbr.rel (%p208) target = $region44
        $region43: #{tpu_custom_call.1} parent=39 // pred_region
          %211 = dma.done [#allocation3], 1024
        $region44: #{tpu_custom_call.1} parent=39 // pred_fallthru
          _
        %s212 = smul.u32 4, %s20
        %p213 = scmp.lt.s32.totalorder %s212, 11
        %s214 = scalar_select %p213, %s212, 11
        %s215 = smul.addr %s214, 4
        %s216 = scalar_lea.vmem %s0, %s215
        %p217 = pneg %p41
        %p218 = pneg %p38
        %p219 = pneg %p62
        %p220 = pneg %p59
        %p221 = pneg %p83
        %p222 = pneg %p80
        %p223 = pneg %p104
        %p224 = pneg %p101
        %p225 = pneg %p125
        %p226 = pneg %p122
        %p227 = pneg %p151
        %p228 = pneg %p148
        %s229 = sand.u32 %s138, 1
        %s230 = scalar_lea.sflag [#allocation4], %s229
        %s231 = sand.u32 %s138, 1
        %s232 = smul.addr %s231, 16
        %s233 = scalar_lea.vmem [#allocation5], %s232
        %s234 = smul.u32 4, %s20
        %p235 = scmp.lt.s32.totalorder %s234, 11
        %s236 = scalar_select %p235, %s234, 11
        %s237 = smul.addr %s236, 4
        %s238 = scalar_lea.vmem %s0, %s237
        %s239 = smul.u32 4, %s20
        %s240 = smul.u32 4, %s20
        %v242 = vld [vmem:[%s238] sm:$0xf]
        %v243 = vld [vmem:[%s238 + $0x4] sm:$0xf]
        %v244 = vld [vmem:[%s238 + $0x8] sm:$0xf]
        %v245 = vld [vmem:[%s238 + $0xc] sm:$0xf]
        %v246 = vld [vmem:[%s1] sm:$0xf]
        %v247 = vld [vmem:[%s1 + $0x4] sm:$0x3]
        %v248 = vld [vmem:[%s4] sm:$0x1]
        %v249 = vlaneseq
        %v250 = vshrl.u32 %v249, 7
        %v251 = vsub.s32 0, %v250
        %v252 = vrot.slane %v248, %v251
        %v257 = vunpack.c.l.b16 %v242
        %v258 = vunpack.c.l.b16 %v243
        %v259 = vunpack.c.l.b16 %v244
        %v260 = vunpack.c.l.b16 %v245
        %v261 = vpack.c.b16 %v258, %v257
        %v262 = vpack.c.b16 %v260, %v259
        %v265 = vunpack.c.l.b16 %v246
        %v266 = vunpack.c.l.b16 %v247
        %v267 = vpack.c.b16 %v266, %v265
        %vm268 = vcmask 97280
        %v270 = vsel %vm268, %v261, 0
        %v273 = vsel %vm268, %v262, 0
        %vm275 = vcmask 1045504
        %v277 = vsel %vm275, %v267, 0
        %279 = vmatprep.subr.bf16.mxu0 0
        %280 = vmatpush1.bf16.msra.mxu0 %v277
        %281 = vmatprep.subr.bf16.mxu0 0
        %282 = vmatpush1.bf16.msra.mxu0 0
        %283 = vmatprep.subr.bf16.mxu0 0
        %284 = vmatpush1.bf16.msra.mxu0 0
        %285 = vmatprep.subr.bf16.mxu0 0
        %286 = vmatpush1.bf16.msra.mxu0 0
        %287 = vmatprep.subr.bf16.mxu0 0
        %288 = vmatpush1.bf16.msra.mxu0 0
        %289 = vmatprep.subr.bf16.mxu0 0
        %290 = vmatpush1.bf16.msra.mxu0 0
        %291 = vmatprep.subr.bf16.mxu0 0
        %292 = vmatpush1.bf16.msra.mxu0 0
        %293 = vmatprep.subr.bf16.mxu0 0
        %294 = vmatpush1.bf16.msra.mxu0 0
        %295 = vmatprep.subr.bf16.mxu0 0
        %296 = vmatpush1.bf16.msra.mxu0 0
        %297 = vmatprep.subr.bf16.mxu0 0
        %298 = vmatpush1.bf16.msra.mxu0 0
        %299 = vmatprep.subr.bf16.mxu0 0
        %300 = vmatpush1.bf16.msra.mxu0 0
        %301 = vmatprep.subr.bf16.mxu0 0
        %302 = vmatpush1.bf16.msra.mxu0 0
        %303 = vmatprep.subr.bf16.mxu0 0
        %304 = vmatpush1.bf16.msra.mxu0 0
        %305 = vmatprep.subr.bf16.mxu0 0
        %306 = vmatpush1.bf16.msra.mxu0 0
        %307 = vmatprep.subr.bf16.mxu0 0
        %308 = vmatpush1.bf16.msra.mxu0 0
        %309 = vmatprep.subr.bf16.mxu0 0
        %310 = vmatpush1.bf16.msra.mxu0 0
        %311 = vmatprep.mubr.bf16.mxu0 0
        %312 = vmatmul.mubr.bf16.gmra.mrb[0].mxu0 %v270
        %v313 = vpop.f32.mrb[0].mxu0
        %v314 = vadd.f32 %v252, %v313
        %v315 = vpop.f32.mrb[0].mxu0
        %v316 = vpop.f32.mrb[0].mxu0
        %v317 = vadd.f32 %v252, %v316
        %v318 = vpop.f32.mrb[0].mxu0
        %319 = vmatprep.mubr.bf16.mxu0 0
        %320 = vmatmul.mubr.bf16.gmra.mrb[0].mxu0 %v273
        %v321 = vpop.f32.mrb[0].mxu0
        %v322 = vadd.f32 %v252, %v321
        %v323 = vpop.f32.mrb[0].mxu0
        %v324 = vpop.f32.mrb[0].mxu0
        %v325 = vadd.f32 %v252, %v324
        %v326 = vpop.f32.mrb[0].mxu0
        %327 = vdwg.mxu0
        %v328 = vmax.f32 %v314, 0.0
        %v329 = vmax.f32 %v317, 0.0
        %v330 = vmax.f32 %v322, 0.0
        %v331 = vmax.f32 %v325, 0.0
        %v332 = vpack.c.bf16 %v329, %v328
        %v333 = vpack.c.bf16 %v331, %v330
        %v334 = vld [vmem:[#allocation2] sm:$0xf]
        %v335 = vld [vmem:[#allocation2 + $0x4] sm:$0xf]
        %v336 = vld [vmem:[#allocation2 + $0x8] sm:$0xf]
        %v337 = vld [vmem:[#allocation2 + $0xc] sm:$0xf]
        %v338 = vld [vmem:[#allocation2 + $0x10] sm:$0xf]
        %v339 = vld [vmem:[#allocation2 + $0x14] sm:$0xf]
        %v340 = vld [vmem:[#allocation2 + $0x18] sm:$0xf]
        %v341 = vld [vmem:[#allocation2 + $0x1c] sm:$0xf]
        %v342 = vld [vmem:[#allocation2 + $0x20] sm:$0xf]
        %v343 = vld [vmem:[#allocation2 + $0x24] sm:$0xf]
        %v344 = vld [vmem:[#allocation2 + $0x28] sm:$0xf]
        %v345 = vld [vmem:[#allocation2 + $0x2c] sm:$0xf]
        %v346 = vld [vmem:[#allocation2 + $0x30] sm:$0xf]
        %v347 = vld [vmem:[#allocation2 + $0x34] sm:$0xf]
        %v348 = vld [vmem:[#allocation2 + $0x38] sm:$0xf]
        %v349 = vld [vmem:[#allocation2 + $0x3c] sm:$0xf]
        %v350 = vld [vmem:[%s3] sm:$0x3]
        %vm351 = vcmask 31744
        %v352 = vsel %vm351, %v261, 0
        %v354 = vsel %vm351, %v262, 0
        %vm356 = vcmask 1041408
        %v358 = vsel %vm356, %v350, 0
        %360 = vmatprep.subr.bf16.mxu0 0
        %361 = vmatpush1.bf16.msra.mxu0 %v358
        %362 = vmatprep.subr.bf16.mxu0 0
        %363 = vmatpush1.bf16.msra.mxu0 0
        %364 = vmatprep.subr.bf16.mxu0 0
        %365 = vmatpush1.bf16.msra.mxu0 0
        %366 = vmatprep.subr.bf16.mxu0 0
        %367 = vmatpush1.bf16.msra.mxu0 0
        %368 = vmatprep.subr.bf16.mxu0 0
        %369 = vmatpush1.bf16.msra.mxu0 0
        %370 = vmatprep.subr.bf16.mxu0 0
        %371 = vmatpush1.bf16.msra.mxu0 0
        %372 = vmatprep.subr.bf16.mxu0 0
        %373 = vmatpush1.bf16.msra.mxu0 0
        %374 = vmatprep.subr.bf16.mxu0 0
        %375 = vmatpush1.bf16.msra.mxu0 0
        %376 = vmatprep.subr.bf16.mxu0 0
        %377 = vmatpush1.bf16.msra.mxu0 0
        %378 = vmatprep.subr.bf16.mxu0 0
        %379 = vmatpush1.bf16.msra.mxu0 0
        %380 = vmatprep.subr.bf16.mxu0 0
        %381 = vmatpush1.bf16.msra.mxu0 0
        %382 = vmatprep.subr.bf16.mxu0 0
        %383 = vmatpush1.bf16.msra.mxu0 0
        %384 = vmatprep.subr.bf16.mxu0 0
        %385 = vmatpush1.bf16.msra.mxu0 0
        %386 = vmatprep.subr.bf16.mxu0 0
        %387 = vmatpush1.bf16.msra.mxu0 0
        %388 = vmatprep.subr.bf16.mxu0 0
        %389 = vmatpush1.bf16.msra.mxu0 0
        %390 = vmatprep.subr.bf16.mxu0 0
        %391 = vmatpush1.bf16.msra.mxu0 0
        %392 = vmatprep.mubr.bf16.mxu0 0
        %393 = vmatmul.mubr.bf16.gmra.mrb[0].mxu0 %v352
        %v394 = vpop.f32.mrb[0].mxu0
        %v395 = vadd.f32 0.0, %v394
        %v396 = vpop.f32.mrb[0].mxu0
        %v397 = vpop.f32.mrb[0].mxu0
        %v398 = vadd.f32 0.0, %v397
        %v399 = vpop.f32.mrb[0].mxu0
        %400 = vmatprep.mubr.bf16.mxu0 0
        %401 = vmatmul.mubr.bf16.gmra.mrb[0].mxu0 %v354
        %v402 = vpop.f32.mrb[0].mxu0
        %v403 = vadd.f32 0.0, %v402
        %v404 = vpop.f32.mrb[0].mxu0
        %v405 = vpop.f32.mrb[0].mxu0
        %v406 = vadd.f32 0.0, %v405
        %v407 = vpop.f32.mrb[0].mxu0
        %408 = vdwg.mxu0
        %v425 = vunpack.c.l.b16 %v334
        %v426 = vunpack.c.l.b16 %v335
        %v427 = vunpack.c.l.b16 %v336
        %v428 = vunpack.c.l.b16 %v337
        %v429 = vunpack.c.l.b16 %v338
        %v430 = vunpack.c.l.b16 %v339
        %v431 = vunpack.c.l.b16 %v340
        %v432 = vunpack.c.l.b16 %v341
        %v433 = vunpack.c.l.b16 %v342
        %v434 = vunpack.c.l.b16 %v343
        %v435 = vunpack.c.l.b16 %v344
        %v436 = vunpack.c.l.b16 %v345
        %v437 = vunpack.c.l.b16 %v346
        %v438 = vunpack.c.l.b16 %v347
        %v439 = vunpack.c.l.b16 %v348
        %v440 = vunpack.c.l.b16 %v349
        %v441 = vpack.c.b16 %v426, %v425
        %v442 = vpack.c.b16 %v428, %v427
        %v443 = vpack.c.b16 %v430, %v429
        %v444 = vpack.c.b16 %v432, %v431
        %v445 = vpack.c.b16 %v434, %v433
        %v446 = vpack.c.b16 %v436, %v435
        %v447 = vpack.c.b16 %v438, %v437
        %v448 = vpack.c.b16 %v440, %v439
        %457 = vmatprep.subr.bf16.mxu0 0
        %458 = vmatpush1.bf16.msra.mxu0 %v441
        %459 = vmatprep.subr.bf16.mxu0 0
        %460 = vmatpush1.bf16.msra.mxu0 %v442
        %461 = vmatprep.subr.bf16.mxu0 0
        %462 = vmatpush1.bf16.msra.mxu0 %v443
        %463 = vmatprep.subr.bf16.mxu0 0
        %464 = vmatpush1.bf16.msra.mxu0 %v444
        %465 = vmatprep.subr.bf16.mxu0 0
        %466 = vmatpush1.bf16.msra.mxu0 %v445
        %467 = vmatprep.subr.bf16.mxu0 0
        %468 = vmatpush1.bf16.msra.mxu0 %v446
        %469 = vmatprep.subr.bf16.mxu0 0
        %470 = vmatpush1.bf16.msra.mxu0 %v447
        %471 = vmatprep.subr.bf16.mxu0 0
        %472 = vmatpush1.bf16.msra.mxu0 %v448
        %473 = vmatprep.subr.bf16.mxu0 0
        %474 = vmatpush1.bf16.msra.mxu0 0
        %475 = vmatprep.subr.bf16.mxu0 0
        %476 = vmatpush1.bf16.msra.mxu0 0
        %477 = vmatprep.subr.bf16.mxu0 0
        %478 = vmatpush1.bf16.msra.mxu0 0
        %479 = vmatprep.subr.bf16.mxu0 0
        %480 = vmatpush1.bf16.msra.mxu0 0
        %481 = vmatprep.subr.bf16.mxu0 0
        %482 = vmatpush1.bf16.msra.mxu0 0
        %483 = vmatprep.subr.bf16.mxu0 0
        %484 = vmatpush1.bf16.msra.mxu0 0
        %485 = vmatprep.subr.bf16.mxu0 0
        %486 = vmatpush1.bf16.msra.mxu0 0
        %487 = vmatprep.subr.bf16.mxu0 0
        %488 = vmatpush1.bf16.msra.mxu0 0
        %489 = vmatprep.mubr.bf16.mxu0 0
        %490 = vmatmul.mubr.bf16.gmra.mrb[0].mxu0 %v332
        %v491 = vpop.f32.mrb[0].mxu0
        %v492 = vadd.f32 %v395, %v491
        %v493 = vpop.f32.mrb[0].mxu0
        %v494 = vpop.f32.mrb[0].mxu0
        %v495 = vadd.f32 %v398, %v494
        %v496 = vpop.f32.mrb[0].mxu0
        %497 = vmatprep.mubr.bf16.mxu0 0
        %498 = vmatmul.mubr.bf16.gmra.mrb[0].mxu0 %v333
        %v499 = vpop.f32.mrb[0].mxu0
        %v500 = vadd.f32 %v403, %v499
        %v501 = vpop.f32.mrb[0].mxu0
        %v502 = vpop.f32.mrb[0].mxu0
        %v503 = vadd.f32 %v406, %v502
        %v504 = vpop.f32.mrb[0].mxu0
        %505 = vdwg.mxu0
        %v506 = vld [vmem:[%s4 + $0x1] sm:$0x1]
        %v507 = vlaneseq
        %v508 = vshrl.u32 %v507, 7
        %v509 = vsub.s32 0, %v508
        %v510 = vrot.slane %v506, %v509
        %v511 = vadd.f32 %v492, %v510
        %v512 = vadd.f32 %v495, %v510
        %v513 = vadd.f32 %v500, %v510
        %v514 = vadd.f32 %v503, %v510
        %v515 = vmax.f32 %v511, 0.0
        %v516 = vmax.f32 %v512, 0.0
        %v517 = vmax.f32 %v513, 0.0
        %v518 = vmax.f32 %v514, 0.0
        %v519 = vpack.c.bf16 %v516, %v515
        %v520 = vpack.c.bf16 %v518, %v517
        %v523 = vunpack.c.l.b16 %v519
        %v524 = vunpack.c.h.b16 %v519
        %v525 = vunpack.c.l.b16 %v520
        %v526 = vunpack.c.h.b16 %v520
        %v527 = vpack.c.b16 %v523, %v523
        %v528 = vpack.c.b16 %v524, %v524
        %v529 = vpack.c.b16 %v525, %v525
        %v530 = vpack.c.b16 %v526, %v526
        %535 = vst [vmem:[%s233] sm:$0xf] %v527
        %536 = vst [vmem:[%s233 + $0x4] sm:$0xf] %v528
        %537 = vst [vmem:[%s233 + $0x8] sm:$0xf] %v529
        %538 = vst [vmem:[%s233 + $0xc] sm:$0xf] %v530
        %s539 = sand.u32 %s138, 1
        %s540 = scalar_lea.sflag [#allocation4], %s539
        %s541 = sand.u32 %s138, 1
        %s542 = smul.addr %s541, 16
        %s543 = scalar_lea.vmem [#allocation5], %s542
        // Predicated region
        $region45: #{tpu_custom_call.1} parent=39 // pred_check
          %p544 = pneg %p148
        $region46: #{tpu_custom_call.1} parent=39 // pred_check_branch
          %546 = sbr.rel (%p544) target = $region48
        $region47: #{tpu_custom_call.1} parent=39 // pred_region
          %s547 = smul.u32 4, %s20
          %s549 = ssub.s32 256, 256
          %550 = vsyncadd %s540, %s549
          %s551 = smul.addr %s547, 64
          %s552 = scalar_lea.hbm %s5, %s551
          %s553 = sshll.u32 %s543, 4
          %s554 = int_to_ptr.vmem [resolvable:$true] %s553
          %559 = dma.vmem_to_hbm [thread:$0]  %s554, 256, %s552, %s540, 64, 64, 4
        $region48: #{tpu_custom_call.1} parent=39 // pred_fallthru
          _
      $region40: #{tpu_custom_call.1} parent=5 // pred_fallthru
        _
      %p560 = scmp.le.s32.totalorder 2, %s15
      // Predicated region
      $region49: #{tpu_custom_call.1} parent=5 // pred_check
        %p561 = pneg %p560
      $region50: #{tpu_custom_call.1} parent=5 // pred_check_branch
        %563 = sbr.rel (%p561) target = $region52
      $region51: #{tpu_custom_call.1} parent=5 // pred_region
        %s564 = ssub.s32 %s15, 2
        // Predicated region
        $region53: #{tpu_custom_call.1} parent=51 // pred_check
          %p565 = pneg %p154
        $region54: #{tpu_custom_call.1} parent=51 // pred_check_branch
          %567 = sbr.rel (%p565) target = $region56
        $region55: #{tpu_custom_call.1} parent=51 // pred_region
          %s568 = sand.u32 %s139, 1
          %s569 = scalar_lea.sflag [#allocation4], %s568
          %s570 = sand.u32 %s139, 1
          %s571 = smul.addr %s570, 16
          %s572 = scalar_lea.vmem [#allocation5], %s571
          %573 = dma.done %s569, 256
        $region56: #{tpu_custom_call.1} parent=51 // pred_fallthru
          _
      $region52: #{tpu_custom_call.1} parent=5 // pred_fallthru
        _
    $region6: #{tpu_custom_call.1} parent=1 // loop_footer
      %s19 = sadd.s32 1, %s15
    $region7: #{tpu_custom_call.1} parent=1 // loop_footer_branch
      %14 = sbr.rel target = $region3
    $region8: #{tpu_custom_call.1} parent=1 // loop_exit
      _
    %574 = vsyncpa [#allocation3], 1
    %s575 = scalar_lea.sflag [#allocation3], 1
    %576 = vsyncpa %s575, 1
    %577 = vsyncpa [#allocation4], 1
    %s578 = scalar_lea.sflag [#allocation4], 1
    %579 = vsyncpa %s578, 1

// kernel: tpu_custom_call.1
$region0: #{tpu_custom_call.1}
  #allocation0 [shape = 'u32[]', space=smem, size = 0x4, offset = 0x4, fixed_abs, tag = 'smem constant byte address 0x4 - core index']
  #allocation1 [shape = 'u32[144,128]{1,0:T(1,128)}', space=vmem, size = 0x12000, scoped, tag = 'internal scratch']
  %s0 = inlined_call_operand.vmem [shape: bf16[96,12], index: 0, kind: input, shape index: {}]
  %s1 = inlined_call_operand.vmem [shape: bf16[12,128], index: 1, kind: input, shape index: {}]
  %s2 = inlined_call_operand.hbm [shape: bf16[128,128], index: 2, kind: input, shape index: {}]
  %s3 = inlined_call_operand.vmem [shape: bf16[4,128], index: 3, kind: input, shape index: {}]
  %s4 = inlined_call_operand.vmem [shape: f32[2,128], index: 4, kind: input, shape index: {}]
  %s5 = inlined_call_operand.hbm [shape: bf16[96,128], index: 5, kind: output, shape index: {}]
  %s6 = sld [smem:[#allocation0]]
  $region57: #{tpu_custom_call.1} parent=0
    _
  %s8 = ssub.s32 1, %s6
  %s9 = scalar_select 0, %s8, %s6
  $region1: #{tpu_custom_call.1} parent=0
    #allocation2 [shape = 'u8[32768]{0}', space=vmem, size = 0x8000, scoped, tag = 'input window, operand 2, single buffered']
    #allocation3 [shape = 's32[2]{0}', space=sflag, size = 0x8, scoped, tag = 'scoped memory for tpu_custom_call.1']
    #allocation4 [shape = 's32[2]{0}', space=sflag, size = 0x8, scoped, tag = 'scoped memory for tpu_custom_call.1']
    #allocation5 [shape = 'u8[16384]{0}', space=vmem, size = 0x4000, scoped, tag = 'output window, operand 0']
    %10 = vsyncpa [#allocation3], 0
    %11 = vsyncpa [#allocation4], 0
    %s12 = scalar_lea.sflag [#allocation4], 1
    %13 = vsyncpa %s12, 0
    loop: start=0, step=1, limit=5
    $region2: #{tpu_custom_call.1} parent=1 // loop_pre_header
      _
    $region3: #{tpu_custom_call.1} parent=1 // loop_header
      %s15 = sphi 0, %s19
      %p16 = scmp.ge.s32.totalorder %s15, 5
      %s25 = sphi 0, %s27
      %s28 = sphi 0, %s25
      %s29 = sphi 0, %s28
      %s45 = sphi 0, %s29
      %s49 = sphi 0, %s49
      %s51 = sphi 0, %s49
      %s52 = sphi 0, %s51
      %s66 = sphi 0, %s52
      %s70 = sphi 0, %s70
      %s72 = sphi 0, %s70
      %s73 = sphi 0, %s72
      %s87 = sphi 0, %s73
      %s91 = sphi 0, %s91
      %s93 = sphi 0, %s91
      %s94 = sphi 0, %s93
      %s108 = sphi 0, %s94
      %s112 = sphi 0, %s112
      %s114 = sphi 0, %s112
      %s115 = sphi 0, %s114
      %s129 = sphi 0, %s115
      %s135 = sphi 0, %s137
      %s138 = sphi 0, %s135
      %s139 = sphi 0, %s138
      %s155 = sphi 0, %s139
    $region4: #{tpu_custom_call.1} parent=1 // loop_header_branch
      %18 = sbr.rel (%p16) target = $region8
    $region5: #{tpu_custom_call.1} parent=1 // loop_body
      %s20 = ssub.s32 %s15, 1
      %s21 = ssub.s32 %s15, 2
      %s22 = sadd.s32 %s15, 1
      %s23 = ssub.s32 %s15, %s22
      %p24 = scmp.eq.s32.totalorder %s23, 0
      %s26 = sadd.s32 %s25, 1
      %s27 = scalar_select %p24, %s25, %s26
      %p30 = pneg %p24
      %p31 = scmp.eq.s32.totalorder %s15, 2
      %p32 = por %p30, %p31
      %p33 = scmp.ne.s32.totalorder %s25, %s28
      %p34 = scmp.eq.s32.totalorder %s15, 0
      %p35 = por %p33, %p34
      %p36 = scmp.ne.s32.totalorder %s25, %s28
      %p37 = scmp.eq.s32.totalorder %s20, 2
      %p38 = por %p36, %p37
      %p39 = scmp.ne.s32.totalorder %s28, %s29
      %p40 = scmp.eq.s32.totalorder %s20, 0
      %p41 = por %p39, %p40
      %p42 = scmp.ne.s32.totalorder %s28, %s29
      %p43 = scmp.eq.s32.totalorder %s21, 2
      %p44 = por %p42, %p43
      %p46 = scmp.ne.s32.totalorder %s29, %s45
      %p47 = scmp.eq.s32.totalorder %s21, 0
      %p48 = por %p46, %p47
      %s50 = sadd.s32 %s49, 1
      %p53 = scmp.eq.s32.totalorder %s15, 2
      %p54 = scmp.ne.s32.totalorder %s49, %s51
      %p55 = scmp.eq.s32.totalorder %s15, 0
      %p56 = por %p54, %p55
      %p57 = scmp.ne.s32.totalorder %s49, %s51
      %p58 = scmp.eq.s32.totalorder %s20, 2
      %p59 = por %p57, %p58
      %p60 = scmp.ne.s32.totalorder %s51, %s52
      %p61 = scmp.eq.s32.totalorder %s20, 0
      %p62 = por %p60, %p61
      %p63 = scmp.ne.s32.totalorder %s51, %s52
      %p64 = scmp.eq.s32.totalorder %s21, 2
      %p65 = por %p63, %p64
      %p67 = scmp.ne.s32.totalorder %s52, %s66
      %p68 = scmp.eq.s32.totalorder %s21, 0
      %p69 = por %p67, %p68
      %s71 = sadd.s32 %s70, 1
      %p74 = scmp.eq.s32.totalorder %s15, 2
      %p75 = scmp.ne.s32.totalorder %s70, %s72
      %p76 = scmp.eq.s32.totalorder %s15, 0
      %p77 = por %p75, %p76
      %p78 = scmp.ne.s32.totalorder %s70, %s72
      %p79 = scmp.eq.s32.totalorder %s20, 2
      %p80 = por %p78, %p79
      %p81 = scmp.ne.s32.totalorder %s72, %s73
      %p82 = scmp.eq.s32.totalorder %s20, 0
      %p83 = por %p81, %p82
      %p84 = scmp.ne.s32.totalorder %s72, %s73
      %p85 = scmp.eq.s32.totalorder %s21, 2
      %p86 = por %p84, %p85
      %p88 = scmp.ne.s32.totalorder %s73, %s87
      %p89 = scmp.eq.s32.totalorder %s21, 0
      %p90 = por %p88, %p89
      %s92 = sadd.s32 %s91, 1
      %p95 = scmp.eq.s32.totalorder %s15, 2
      %p96 = scmp.ne.s32.totalorder %s91, %s93
      %p97 = scmp.eq.s32.totalorder %s15, 0
      %p98 = por %p96, %p97
      %p99 = scmp.ne.s32.totalorder %s91, %s93
      %p100 = scmp.eq.s32.totalorder %s20, 2
      %p101 = por %p99, %p100
      %p102 = scmp.ne.s32.totalorder %s93, %s94
      %p103 = scmp.eq.s32.totalorder %s20, 0
      %p104 = por %p102, %p103
      %p105 = scmp.ne.s32.totalorder %s93, %s94
      %p106 = scmp.eq.s32.totalorder %s21, 2
      %p107 = por %p105, %p106
      %p109 = scmp.ne.s32.totalorder %s94, %s108
      %p110 = scmp.eq.s32.totalorder %s21, 0
      %p111 = por %p109, %p110
      %s113 = sadd.s32 %s112, 1
      %p116 = scmp.eq.s32.totalorder %s15, 2
      %p117 = scmp.ne.s32.totalorder %s112, %s114
      %p118 = scmp.eq.s32.totalorder %s15, 0
      %p119 = por %p117, %p118
      %p120 = scmp.ne.s32.totalorder %s112, %s114
      %p121 = scmp.eq.s32.totalorder %s20, 2
      %p122 = por %p120, %p121
      %p123 = scmp.ne.s32.totalorder %s114, %s115
      %p124 = scmp.eq.s32.totalorder %s20, 0
      %p125 = por %p123, %p124
      %p126 = scmp.ne.s32.totalorder %s114, %s115
      %p127 = scmp.eq.s32.totalorder %s21, 2
      %p128 = por %p126, %p127
      %p130 = scmp.ne.s32.totalorder %s115, %s129
      %p131 = scmp.eq.s32.totalorder %s21, 0
      %p132 = por %p130, %p131
      %s133 = ssub.s32 %s15, %s22
      %p134 = scmp.eq.s32.totalorder %s133, 0
      %s136 = sadd.s32 %s135, 1
      %s137 = scalar_select %p134, %s135, %s136
      %p140 = pneg %p134
      %p141 = scmp.eq.s32.totalorder %s15, 2
      %p142 = por %p140, %p141
      %p143 = scmp.ne.s32.totalorder %s135, %s138
      %p144 = scmp.eq.s32.totalorder %s15, 0
      %p145 = por %p143, %p144
      %p146 = scmp.ne.s32.totalorder %s135, %s138
      %p147 = scmp.eq.s32.totalorder %s20, 2
      %p148 = por %p146, %p147
      %p149 = scmp.ne.s32.totalorder %s138, %s139
      %p150 = scmp.eq.s32.totalorder %s20, 0
      %p151 = por %p149, %p150
      %p152 = scmp.ne.s32.totalorder %s138, %s139
      %p153 = scmp.eq.s32.totalorder %s21, 2
      %p154 = por %p152, %p153
      %p156 = scmp.ne.s32.totalorder %s139, %s155
      %p157 = scmp.eq.s32.totalorder %s21, 0
      %p158 = por %p156, %p157
      %p159 = scmp.le.s32.totalorder 1, %s15
      %p160 = scmp.lt.s32.totalorder %s15, 4
      %p161 = pnand %p159, %p160
      %p162 = pneg %p161
      // Predicated region
      $region9: #{tpu_custom_call.1} parent=5 // pred_check
        _
      $region10: #{tpu_custom_call.1} parent=5 // pred_check_branch
        %164 = sbr.rel (%p161) target = $region12
      $region11: #{tpu_custom_call.1} parent=5 // pred_region
        %s165 = ssub.s32 %s15, 1
        // Predicated region
        $region13: #{tpu_custom_call.1} parent=11 // pred_check
          %p166 = pneg %p62
        $region14: #{tpu_custom_call.1} parent=11 // pred_check_branch
          %168 = sbr.rel (%p166) target = $region16
        $region15: #{tpu_custom_call.1} parent=11 // pred_region
          _
        $region16: #{tpu_custom_call.1} parent=11 // pred_fallthru
          _
        // Predicated region
        $region17: #{tpu_custom_call.1} parent=11 // pred_check
          %p169 = pneg %p83
        $region18: #{tpu_custom_call.1} parent=11 // pred_check_branch
          %171 = sbr.rel (%p169) target = $region20
        $region19: #{tpu_custom_call.1} parent=11 // pred_region
          %s173 = ssub.s32 1024, 1024
          %174 = vsyncadd [#allocation3], %s173
          %s175 = sshll.u32 [#allocation2], 4
          %s176 = int_to_ptr.vmem [resolvable:$true] %s175
          %181 = dma.hbm_to_vmem [thread:$0]  %s2, 1024, %s176, [#allocation3], 64, 64, 4
        $region20: #{tpu_custom_call.1} parent=11 // pred_fallthru
          _
        // Predicated region
        $region21: #{tpu_custom_call.1} parent=11 // pred_check
          %p182 = pneg %p104
        $region22: #{tpu_custom_call.1} parent=11 // pred_check_branch
          %184 = sbr.rel (%p182) target = $region24
        $region23: #{tpu_custom_call.1} parent=11 // pred_region
          _
        $region24: #{tpu_custom_call.1} parent=11 // pred_fallthru
          _
        // Predicated region
        $region25: #{tpu_custom_call.1} parent=11 // pred_check
          %p185 = pneg %p125
        $region26: #{tpu_custom_call.1} parent=11 // pred_check_branch
          %187 = sbr.rel (%p185) target = $region28
        $region27: #{tpu_custom_call.1} parent=11 // pred_region
          _
        $region28: #{tpu_custom_call.1} parent=11 // pred_fallthru
          _
      $region12: #{tpu_custom_call.1} parent=5 // pred_fallthru
        _
      %p188 = scmp.lt.s32.totalorder %s15, 3
      // Predicated region
      $region29: #{tpu_custom_call.1} parent=5 // pred_check
        %p189 = pneg %p188
      $region30: #{tpu_custom_call.1} parent=5 // pred_check_branch
        %191 = sbr.rel (%p189) target = $region32
      $region31: #{tpu_custom_call.1} parent=5 // pred_region
        // Predicated region
        $region33: #{tpu_custom_call.1} parent=31 // pred_check
          %p192 = pneg %p35
        $region34: #{tpu_custom_call.1} parent=31 // pred_check_branch
          %194 = sbr.rel (%p192) target = $region36
        $region35: #{tpu_custom_call.1} parent=31 // pred_region
          %s195 = smul.u32 4, %s15
          %p196 = scmp.lt.s32.totalorder %s195, 11
          %s197 = scalar_select %p196, %s195, 11
          %s198 = smul.addr %s197, 4
          %s199 = scalar_lea.vmem %s0, %s198
          %s200 = smul.u32 4, %s15
        $region36: #{tpu_custom_call.1} parent=31 // pred_fallthru
          _
      $region32: #{tpu_custom_call.1} parent=5 // pred_fallthru
        _
      %p201 = scmp.le.s32.totalorder 1, %s15
      %p202 = scmp.lt.s32.totalorder %s15, 4
      %p203 = pnand %p201, %p202
      %p204 = pneg %p203
      // Predicated region
      $region37: #{tpu_custom_call.1} parent=5 // pred_check
        _
      $region38: #{tpu_custom_call.1} parent=5 // pred_check_branch
        %206 = sbr.rel (%p203) target = $region40
      $region39: #{tpu_custom_call.1} parent=5 // pred_region
        %s207 = ssub.s32 %s15, 1
        // Predicated region
        $region41: #{tpu_custom_call.1} parent=39 // pred_check
          %p208 = pneg %p83
        $region42: #{tpu_custom_call.1} parent=39 // pred_check_branch
          %210 = sbr.rel (%p208) target = $region44
        $region43: #{tpu_custom_call.1} parent=39 // pred_region
          %211 = dma.done [#allocation3], 1024
        $region44: #{tpu_custom_call.1} parent=39 // pred_fallthru
          _
        %s212 = smul.u32 4, %s20
        %p213 = scmp.lt.s32.totalorder %s212, 11
        %s214 = scalar_select %p213, %s212, 11
        %s215 = smul.addr %s214, 4
        %s216 = scalar_lea.vmem %s0, %s215
        %p217 = pneg %p41
        %p218 = pneg %p38
        %p219 = pneg %p62
        %p220 = pneg %p59
        %p221 = pneg %p83
        %p222 = pneg %p80
        %p223 = pneg %p104
        %p224 = pneg %p101
        %p225 = pneg %p125
        %p226 = pneg %p122
        %p227 = pneg %p151
        %p228 = pneg %p148
        %s229 = sand.u32 %s138, 1
        %s230 = scalar_lea.sflag [#allocation4], %s229
        %s231 = sand.u32 %s138, 1
        %s232 = smul.addr %s231, 16
        %s233 = scalar_lea.vmem [#allocation5], %s232
        %s234 = smul.u32 4, %s20
        %p235 = scmp.lt.s32.totalorder %s234, 11
        %s236 = scalar_select %p235, %s234, 11
        %s237 = smul.addr %s236, 4
        %s238 = scalar_lea.vmem %s0, %s237
        %s239 = smul.u32 4, %s20
        %s240 = smul.u32 4, %s20
        %v242 = vld [vmem:[%s238] sm:$0xf]
        %v243 = vld [vmem:[%s238 + $0x4] sm:$0xf]
        %v244 = vld [vmem:[%s238 + $0x8] sm:$0xf]
        %v245 = vld [vmem:[%s238 + $0xc] sm:$0xf]
        %v246 = vld [vmem:[%s1] sm:$0xf]
        %v247 = vld [vmem:[%s1 + $0x4] sm:$0x3]
        %v248 = vld [vmem:[%s4] sm:$0x1]
        %v249 = vlaneseq
        %v250 = vshrl.u32 %v249, 7
        %v251 = vsub.s32 0, %v250
        %v252 = vrot.slane %v248, %v251
        %v257 = vunpack.c.l.b16 %v242
        %v258 = vunpack.c.l.b16 %v243
        %v259 = vunpack.c.l.b16 %v244
        %v260 = vunpack.c.l.b16 %v245
        %v261 = vpack.c.b16 %v258, %v257
        %v262 = vpack.c.b16 %v260, %v259
        %v265 = vunpack.c.l.b16 %v246
        %v266 = vunpack.c.l.b16 %v247
        %v267 = vpack.c.b16 %v266, %v265
        %vm268 = vcmask 97280
        %v270 = vsel %vm268, %v261, 0
        %v273 = vsel %vm268, %v262, 0
        %vm275 = vcmask 1045504
        %v277 = vsel %vm275, %v267, 0
        %279 = vmatprep.subr.bf16.mxu0 0
        %280 = vmatpush1.bf16.msra.mxu0 %v277
        %281 = vmatprep.subr.bf16.mxu0 0
        %282 = vmatpush1.bf16.msra.mxu0 0
        %283 = vmatprep.subr.bf16.mxu0 0
        %284 = vmatpush1.bf16.msra.mxu0 0
        %285 = vmatprep.subr.bf16.mxu0 0
        %286 = vmatpush1.bf16.msra.mxu0 0
        %287 = vmatprep.subr.bf16.mxu0 0
        %288 = vmatpush1.bf16.msra.mxu0 0
        %289 = vmatprep.subr.bf16.mxu0 0
        %290 = vmatpush1.bf16.msra.mxu0 0
        %291 = vmatprep.subr.bf16.mxu0 0
        %292 = vmatpush1.bf16.msra.mxu0 0
        %293 = vmatprep.subr.bf16.mxu0 0
        %294 = vmatpush1.bf16.msra.mxu0 0
        %295 = vmatprep.subr.bf16.mxu0 0
        %296 = vmatpush1.bf16.msra.mxu0 0
        %297 = vmatprep.subr.bf16.mxu0 0
        %298 = vmatpush1.bf16.msra.mxu0 0
        %299 = vmatprep.subr.bf16.mxu0 0
        %300 = vmatpush1.bf16.msra.mxu0 0
        %301 = vmatprep.subr.bf16.mxu0 0
        %302 = vmatpush1.bf16.msra.mxu0 0
        %303 = vmatprep.subr.bf16.mxu0 0
        %304 = vmatpush1.bf16.msra.mxu0 0
        %305 = vmatprep.subr.bf16.mxu0 0
        %306 = vmatpush1.bf16.msra.mxu0 0
        %307 = vmatprep.subr.bf16.mxu0 0
        %308 = vmatpush1.bf16.msra.mxu0 0
        %309 = vmatprep.subr.bf16.mxu0 0
        %310 = vmatpush1.bf16.msra.mxu0 0
        %311 = vmatprep.mubr.bf16.mxu0 0
        %312 = vmatmul.mubr.bf16.gmra.mrb[0].mxu0 %v270
        %v313 = vpop.f32.mrb[0].mxu0
        %v314 = vadd.f32 %v252, %v313
        %v315 = vpop.f32.mrb[0].mxu0
        %v316 = vpop.f32.mrb[0].mxu0
        %v317 = vadd.f32 %v252, %v316
        %v318 = vpop.f32.mrb[0].mxu0
        %319 = vmatprep.mubr.bf16.mxu0 0
        %320 = vmatmul.mubr.bf16.gmra.mrb[0].mxu0 %v273
        %v321 = vpop.f32.mrb[0].mxu0
        %v322 = vadd.f32 %v252, %v321
        %v323 = vpop.f32.mrb[0].mxu0
        %v324 = vpop.f32.mrb[0].mxu0
        %v325 = vadd.f32 %v252, %v324
        %v326 = vpop.f32.mrb[0].mxu0
        %327 = vdwg.mxu0
        %v328 = vmax.f32 %v314, 0.0
        %v329 = vmax.f32 %v317, 0.0
        %v330 = vmax.f32 %v322, 0.0
        %v331 = vmax.f32 %v325, 0.0
        %v332 = vpack.c.bf16 %v329, %v328
        %v333 = vpack.c.bf16 %v331, %v330
        %v334 = vld [vmem:[#allocation2] sm:$0xf]
        %v335 = vld [vmem:[#allocation2 + $0x4] sm:$0xf]
        %v336 = vld [vmem:[#allocation2 + $0x8] sm:$0xf]
        %v337 = vld [vmem:[#allocation2 + $0xc] sm:$0xf]
        %v338 = vld [vmem:[#allocation2 + $0x10] sm:$0xf]
        %v339 = vld [vmem:[#allocation2 + $0x14] sm:$0xf]
        %v340 = vld [vmem:[#allocation2 + $0x18] sm:$0xf]
        %v341 = vld [vmem:[#allocation2 + $0x1c] sm:$0xf]
        %v342 = vld [vmem:[#allocation2 + $0x20] sm:$0xf]
        %v343 = vld [vmem:[#allocation2 + $0x24] sm:$0xf]
        %v344 = vld [vmem:[#allocation2 + $0x28] sm:$0xf]
        %v345 = vld [vmem:[#allocation2 + $0x2c] sm:$0xf]
        %v346 = vld [vmem:[#allocation2 + $0x30] sm:$0xf]
        %v347 = vld [vmem:[#allocation2 + $0x34] sm:$0xf]
        %v348 = vld [vmem:[#allocation2 + $0x38] sm:$0xf]
        %v349 = vld [vmem:[#allocation2 + $0x3c] sm:$0xf]
        %v350 = vld [vmem:[%s3] sm:$0x3]
        %vm351 = vcmask 31744
        %v352 = vsel %vm351, %v261, 0
        %v354 = vsel %vm351, %v262, 0
        %vm356 = vcmask 1041408
        %v358 = vsel %vm356, %v350, 0
        %360 = vmatprep.subr.bf16.mxu0 0
        %361 = vmatpush1.bf16.msra.mxu0 %v358
        %362 = vmatprep.subr.bf16.mxu0 0
        %363 = vmatpush1.bf16.msra.mxu0 0
        %364 = vmatprep.subr.bf16.mxu0 0
        %365 = vmatpush1.bf16.msra.mxu0 0
        %366 = vmatprep.subr.bf16.mxu0 0
        %367 = vmatpush1.bf16.msra.mxu0 0
        %368 = vmatprep.subr.bf16.mxu0 0
        %369 = vmatpush1.bf16.msra.mxu0 0
        %370 = vmatprep.subr.bf16.mxu0 0
        %371 = vmatpush1.bf16.msra.mxu0 0
        %372 = vmatprep.subr.bf16.mxu0 0
        %373 = vmatpush1.bf16.msra.mxu0 0
        %374 = vmatprep.subr.bf16.mxu0 0
        %375 = vmatpush1.bf16.msra.mxu0 0
        %376 = vmatprep.subr.bf16.mxu0 0
        %377 = vmatpush1.bf16.msra.mxu0 0
        %378 = vmatprep.subr.bf16.mxu0 0
        %379 = vmatpush1.bf16.msra.mxu0 0
        %380 = vmatprep.subr.bf16.mxu0 0
        %381 = vmatpush1.bf16.msra.mxu0 0
        %382 = vmatprep.subr.bf16.mxu0 0
        %383 = vmatpush1.bf16.msra.mxu0 0
        %384 = vmatprep.subr.bf16.mxu0 0
        %385 = vmatpush1.bf16.msra.mxu0 0
        %386 = vmatprep.subr.bf16.mxu0 0
        %387 = vmatpush1.bf16.msra.mxu0 0
        %388 = vmatprep.subr.bf16.mxu0 0
        %389 = vmatpush1.bf16.msra.mxu0 0
        %390 = vmatprep.subr.bf16.mxu0 0
        %391 = vmatpush1.bf16.msra.mxu0 0
        %392 = vmatprep.mubr.bf16.mxu0 0
        %393 = vmatmul.mubr.bf16.gmra.mrb[0].mxu0 %v352
        %v394 = vpop.f32.mrb[0].mxu0
        %v395 = vadd.f32 0.0, %v394
        %v396 = vpop.f32.mrb[0].mxu0
        %v397 = vpop.f32.mrb[0].mxu0
        %v398 = vadd.f32 0.0, %v397
        %v399 = vpop.f32.mrb[0].mxu0
        %400 = vmatprep.mubr.bf16.mxu0 0
        %401 = vmatmul.mubr.bf16.gmra.mrb[0].mxu0 %v354
        %v402 = vpop.f32.mrb[0].mxu0
        %v403 = vadd.f32 0.0, %v402
        %v404 = vpop.f32.mrb[0].mxu0
        %v405 = vpop.f32.mrb[0].mxu0
        %v406 = vadd.f32 0.0, %v405
        %v407 = vpop.f32.mrb[0].mxu0
        %408 = vdwg.mxu0
        %v425 = vunpack.c.l.b16 %v334
        %v426 = vunpack.c.l.b16 %v335
        %v427 = vunpack.c.l.b16 %v336
        %v428 = vunpack.c.l.b16 %v337
        %v429 = vunpack.c.l.b16 %v338
        %v430 = vunpack.c.l.b16 %v339
        %v431 = vunpack.c.l.b16 %v340
        %v432 = vunpack.c.l.b16 %v341
        %v433 = vunpack.c.l.b16 %v342
        %v434 = vunpack.c.l.b16 %v343
        %v435 = vunpack.c.l.b16 %v344
        %v436 = vunpack.c.l.b16 %v345
        %v437 = vunpack.c.l.b16 %v346
        %v438 = vunpack.c.l.b16 %v347
        %v439 = vunpack.c.l.b16 %v348
        %v440 = vunpack.c.l.b16 %v349
        %v441 = vpack.c.b16 %v426, %v425
        %v442 = vpack.c.b16 %v428, %v427
        %v443 = vpack.c.b16 %v430, %v429
        %v444 = vpack.c.b16 %v432, %v431
        %v445 = vpack.c.b16 %v434, %v433
        %v446 = vpack.c.b16 %v436, %v435
        %v447 = vpack.c.b16 %v438, %v437
        %v448 = vpack.c.b16 %v440, %v439
        %457 = vmatprep.subr.bf16.mxu0 0
        %458 = vmatpush1.bf16.msra.mxu0 %v441
        %459 = vmatprep.subr.bf16.mxu0 0
        %460 = vmatpush1.bf16.msra.mxu0 %v442
        %461 = vmatprep.subr.bf16.mxu0 0
        %462 = vmatpush1.bf16.msra.mxu0 %v443
        %463 = vmatprep.subr.bf16.mxu0 0
        %464 = vmatpush1.bf16.msra.mxu0 %v444
        %465 = vmatprep.subr.bf16.mxu0 0
        %466 = vmatpush1.bf16.msra.mxu0 %v445
        %467 = vmatprep.subr.bf16.mxu0 0
        %468 = vmatpush1.bf16.msra.mxu0 %v446
        %469 = vmatprep.subr.bf16.mxu0 0
        %470 = vmatpush1.bf16.msra.mxu0 %v447
        %471 = vmatprep.subr.bf16.mxu0 0
        %472 = vmatpush1.bf16.msra.mxu0 %v448
        %473 = vmatprep.subr.bf16.mxu0 0
        %474 = vmatpush1.bf16.msra.mxu0 0
        %475 = vmatprep.subr.bf16.mxu0 0
        %476 = vmatpush1.bf16.msra.mxu0 0
        %477 = vmatprep.subr.bf16.mxu0 0
        %478 = vmatpush1.bf16.msra.mxu0 0
        %479 = vmatprep.subr.bf16.mxu0 0
        %480 = vmatpush1.bf16.msra.mxu0 0
        %481 = vmatprep.subr.bf16.mxu0 0
        %482 = vmatpush1.bf16.msra.mxu0 0
        %483 = vmatprep.subr.bf16.mxu0 0
        %484 = vmatpush1.bf16.msra.mxu0 0
        %485 = vmatprep.subr.bf16.mxu0 0
        %486 = vmatpush1.bf16.msra.mxu0 0
        %487 = vmatprep.subr.bf16.mxu0 0
        %488 = vmatpush1.bf16.msra.mxu0 0
        %489 = vmatprep.mubr.bf16.mxu0 0
        %490 = vmatmul.mubr.bf16.gmra.mrb[0].mxu0 %v332
        %v491 = vpop.f32.mrb[0].mxu0
        %v492 = vadd.f32 %v395, %v491
        %v493 = vpop.f32.mrb[0].mxu0
        %v494 = vpop.f32.mrb[0].mxu0
        %v495 = vadd.f32 %v398, %v494
        %v496 = vpop.f32.mrb[0].mxu0
        %497 = vmatprep.mubr.bf16.mxu0 0
        %498 = vmatmul.mubr.bf16.gmra.mrb[0].mxu0 %v333
        %v499 = vpop.f32.mrb[0].mxu0
        %v500 = vadd.f32 %v403, %v499
        %v501 = vpop.f32.mrb[0].mxu0
        %v502 = vpop.f32.mrb[0].mxu0
        %v503 = vadd.f32 %v406, %v502
        %v504 = vpop.f32.mrb[0].mxu0
        %505 = vdwg.mxu0
        %v506 = vld [vmem:[%s4 + $0x1] sm:$0x1]
        %v507 = vlaneseq
        %v508 = vshrl.u32 %v507, 7
        %v509 = vsub.s32 0, %v508
        %v510 = vrot.slane %v506, %v509
        %v511 = vadd.f32 %v492, %v510
        %v512 = vadd.f32 %v495, %v510
        %v513 = vadd.f32 %v500, %v510
        %v514 = vadd.f32 %v503, %v510
        %v515 = vmax.f32 %v511, 0.0
        %v516 = vmax.f32 %v512, 0.0
        %v517 = vmax.f32 %v513, 0.0
        %v518 = vmax.f32 %v514, 0.0
        %v519 = vpack.c.bf16 %v516, %v515
        %v520 = vpack.c.bf16 %v518, %v517
        %v523 = vunpack.c.l.b16 %v519
        %v524 = vunpack.c.h.b16 %v519
        %v525 = vunpack.c.l.b16 %v520
        %v526 = vunpack.c.h.b16 %v520
        %v527 = vpack.c.b16 %v523, %v523
        %v528 = vpack.c.b16 %v524, %v524
        %v529 = vpack.c.b16 %v525, %v525
        %v530 = vpack.c.b16 %v526, %v526
        %535 = vst [vmem:[%s233] sm:$0xf] %v527
        %536 = vst [vmem:[%s233 + $0x4] sm:$0xf] %v528
        %537 = vst [vmem:[%s233 + $0x8] sm:$0xf] %v529
        %538 = vst [vmem:[%s233 + $0xc] sm:$0xf] %v530
        %s539 = sand.u32 %s138, 1
        %s540 = scalar_lea.sflag [#allocation4], %s539
        %s541 = sand.u32 %s138, 1
        %s542 = smul.addr %s541, 16
        %s543 = scalar_lea.vmem [#allocation5], %s542
        // Predicated region
        $region45: #{tpu_custom_call.1} parent=39 // pred_check
          %p544 = pneg %p148
        $region46: #{tpu_custom_call.1} parent=39 // pred_check_branch
          %546 = sbr.rel (%p544) target = $region48
        $region47: #{tpu_custom_call.1} parent=39 // pred_region
          %s547 = smul.u32 4, %s20
          %s549 = ssub.s32 256, 256
          %550 = vsyncadd %s540, %s549
          %s551 = smul.addr %s547, 64
          %s552 = scalar_lea.hbm %s5, %s551
          %s553 = sshll.u32 %s543, 4
          %s554 = int_to_ptr.vmem [resolvable:$true] %s553
          %559 = dma.vmem_to_hbm [thread:$0]  %s554, 256, %s552, %s540, 64, 64, 4
        $region48: #{tpu_custom_call.1} parent=39 // pred_fallthru
          _
      $region40: #{tpu_custom_call.1} parent=5 // pred_fallthru
        _
      %p560 = scmp.le.s32.totalorder 2, %s15
      // Predicated region
      $region49: #{tpu_custom_call.1} parent=5 // pred_check
        %p561 = pneg %p560
      $region50: #{tpu_custom_call.1} parent=5 // pred_check_branch
        %563 = sbr.rel (%p561) target = $region52
      $region51: #{tpu_custom_call.1} parent=5 // pred_region
        %s564 = ssub.s32 %s15, 2
        // Predicated region
        $region53: #{tpu_custom_call.1} parent=51 // pred_check
          %p565 = pneg %p154
        $region54: #{tpu_custom_call.1} parent=51 // pred_check_branch
          %567 = sbr.rel (%p565) target = $region56
        $region55: #{tpu_custom_call.1} parent=51 // pred_region
          %s568 = sand.u32 %s139, 1
          %s569 = scalar_lea.sflag [#allocation4], %s568
          %s570 = sand.u32 %s139, 1
          %s571 = smul.addr %s570, 16
          %s572 = scalar_lea.vmem [#allocation5], %s571
          %573 = dma.done %s569, 256
        $region56: #{tpu_custom_call.1} parent=51 // pred_fallthru
          _
      $region52: #{tpu_custom_call.1} parent=5 // pred_fallthru
        _
    $region6: #{tpu_custom_call.1} parent=1 // loop_footer
      %s19 = sadd.s32 1, %s15
    $region7: #{tpu_custom_call.1} parent=1 // loop_footer_branch
      %14 = sbr.rel target = $region3
    $region8: #{tpu_custom_call.1} parent=1 // loop_exit
      _
    %574 = vsyncpa [#allocation3], 1
    %s575 = scalar_lea.sflag [#allocation3], 1
    %576 = vsyncpa %s575, 1
    %577 = vsyncpa [#allocation4], 1
    %s578 = scalar_lea.sflag [#allocation4], 1
    %579 = vsyncpa %s578, 1

</llo_original>
